<compile_context>
chip_gen: v7x
topology: tpu7x:2x2x1
jax: 0.10.0
libtpu: 0.0.40
codegen_flags: <defaults>
</compile_context>

<pallas_src>
import functools

import jax
import jax.numpy as jnp
from jax import lax
from jax.experimental import pallas as pl
from jax.experimental.pallas import tpu as pltpu


def _round_up(x: int, m: int) -> int:
    return ((x + m - 1) // m) * m


# Conservative in-kernel VMEM budget, safe on every generation once
# vmem_limit_bytes is raised (v7x has only 64 MiB physical per TensorCore).
_VMEM_BUDGET_BYTES = 24 * 1024 * 1024
# Tables bigger than this (or with many rows) use the DMA row-gather path.
_ONEHOT_TABLE_BYTES_MAX = 8 * 1024 * 1024
_ONEHOT_NT_MAX = 2048


def _onehot_gather_kernel(ids_ref, table_ref, out_ref):
    """Gather as (one-hot @ table) on the MXU.

    ids_ref:   VMEM [tb, 1]  int32   (theme ids for this batch tile)
    table_ref: VMEM [NT, E]  float   (whole table, resident, single-buffered)
    out_ref:   VMEM [tb, E]  float
    """
    ids = ids_ref[...]                                    # (tb, 1)
    tb = ids.shape[0]
    nt = table_ref.shape[0]
    iota = lax.broadcasted_iota(jnp.int32, (tb, nt), 1)
    onehot = (ids == iota).astype(table_ref.dtype)        # exact 0/1 weights
    # NOTE: out-of-range ids produce an all-zero row here (nn.Embedding would
    # raise); inputs are assumed valid, as in the PyTorch module.
    out_ref[...] = jnp.dot(
        onehot, table_ref[...], preferred_element_type=jnp.float32
    ).astype(out_ref.dtype)


def _row_copy_kernel(ids_ref, row_ref, out_ref):
    # ids_ref lives in SMEM (scalar prefetch) and is consumed only by the
    # index_maps; the kernel body is a straight row copy.
    del ids_ref
    out_ref[...] = row_ref[...]


def _onehot_vmem_bytes(nt: int, e: int, tb: int, itemsize: int) -> int:
    table_b = nt * e * itemsize          # pl.Buffered(1): a single copy
    out_b = 2 * tb * e * itemsize        # double-buffered output blocks
    ids_b = 2 * tb * 4                   # double-buffered id blocks
    onehot_b = tb * nt * 4               # one-hot intermediate
    acc_b = tb * e * 4                   # f32 matmul result
    return table_b + out_b + ids_b + onehot_b + acc_b


@functools.partial(jax.jit, static_argnames=("tile_b", "gather_mode"))
def goal_embedding(theme_ids, table, *, tile_b: int = 256, gather_mode: str = "auto"):
    """theme_ids: [B] int, table: [num_themes, E] -> [B, E] == table[theme_ids]."""
    B = theme_ids.shape[0]
    NT, E = table.shape
    itemsize = jnp.dtype(table.dtype).itemsize
    ids32 = theme_ids.astype(jnp.int32)

    if gather_mode == "auto":
        gather_mode = (
            "onehot"
            if (NT * E * itemsize <= _ONEHOT_TABLE_BYTES_MAX and NT <= _ONEHOT_NT_MAX)
            else "rows"
        )

    if gather_mode == "rows":
        # Scalar-prefetch DMA row gather (large tables): theme_ids sit in SMEM
        # and drive the table's index_map -> only B*E elements cross HBM.
        return pl.pallas_call(
            _row_copy_kernel,
            out_shape=jax.ShapeDtypeStruct((B, E), table.dtype),
            grid_spec=pltpu.PrefetchScalarGridSpec(
                num_scalar_prefetch=1,
                grid=(B,),
                in_specs=[pl.BlockSpec((1, E), lambda b, ids: (ids[b], 0))],
                out_specs=pl.BlockSpec((1, E), lambda b, ids: (b, 0)),
            ),
            compiler_params=pltpu.CompilerParams(
                dimension_semantics=("arbitrary",),
                vmem_limit_bytes=32 * 1024 * 1024,
            ),
        )(ids32, table)

    # ---- one-hot MXU path: small table kept VMEM-resident ------------------
    # Batch tile: multiple of 8 (sublane rule), default 256, clamped by the
    # VMEM budget so it never spills on v7x's 64 MiB VMEM.
    tb = max(8, min(int(tile_b), _round_up(B, 8)))
    tb = (tb // 8) * 8
    while tb > 8 and _onehot_vmem_bytes(NT, E, tb, itemsize) > _VMEM_BUDGET_BYTES:
        tb = max(8, ((tb // 2) // 8) * 8)
    B_pad = _round_up(B, tb)

    # Cheap id pad only; the table is passed through untouched (no per-call
    # jnp.pad copy) and E is NOT padded to 128: the output block's last dim
    # equals the full array dim, avoiding 4x HBM write traffic when E < 128.
    ids_padded = jnp.pad(ids32, (0, B_pad - B)).reshape(B_pad, 1)

    vmem_limit = int(
        min(64 * 1024 * 1024,
            max(32 * 1024 * 1024,
                _onehot_vmem_bytes(NT, E, tb, itemsize) + (8 << 20)))
    )

    out_padded = pl.pallas_call(
        _onehot_gather_kernel,
        out_shape=jax.ShapeDtypeStruct((B_pad, E), table.dtype),
        grid=(B_pad // tb,),
        in_specs=[
            # Theme ids for this batch tile.
            pl.BlockSpec((tb, 1), lambda i: (i, 0)),
            # Whole table, constant block index, single-buffered: fetched once
            # and kept resident (half the VMEM of default double-buffering).
            pl.BlockSpec((NT, E), lambda i: (0, 0), pipeline_mode=pl.Buffered(1)),
        ],
        out_specs=pl.BlockSpec((tb, E), lambda i: (i, 0)),
        compiler_params=pltpu.CompilerParams(
            # Batch tiles are independent -> shardable across v7x's 2 TCs.
            dimension_semantics=("parallel",),
            vmem_limit_bytes=vmem_limit,
        ),
    )(ids_padded, table)

    return out_padded[:B]


if __name__ == "__main__":
    num_themes = 16
    embed_dim = 32
    batch = 2

    key = jax.random.PRNGKey(0)
    k_table, k_ids = jax.random.split(key)

    # nn.Embedding default init: weight ~ N(0, 1), shape [num_themes, embed_dim]
    table = jax.random.normal(k_table, (num_themes, embed_dim), dtype=jnp.float32)
    theme_ids = jax.random.randint(k_ids, (batch,), 0, num_themes, dtype=jnp.int32)

    ref = table[theme_ids]

    # Default (auto -> one-hot MXU path for this small resident table).
    out = jax.block_until_ready(goal_embedding(theme_ids, table))
    assert out.shape == (batch, embed_dim)
    assert out.dtype == jnp.float32
    assert bool(jnp.allclose(out, ref)), "one-hot path mismatch vs reference"

    # Large-table path (scalar-prefetch DMA row gather) on the same inputs.
    out_rows = jax.block_until_ready(
        goal_embedding(theme_ids, table, gather_mode="rows")
    )
    assert out_rows.shape == (batch, embed_dim)
    assert bool(jnp.allclose(out_rows, ref)), "row-gather path mismatch vs reference"

    print("KERNEL_OK")
</pallas_src>

<mosaic_0001>
module attributes {stable_mosaic.version = 11 : i64} {
  func.func @_onehot_gather_kernel(%arg0: i32, %arg1: memref<8x1xi32, #tpu.memory_space<vmem>>, %arg2: memref<16x32xf32, #tpu.memory_space<vmem>>, %arg3: memref<8x32xf32, #tpu.memory_space<vmem>>) attributes {dimension_semantics = [#tpu.dimension_semantics<parallel>], iteration_bounds = array<i64: 1>, scalar_prefetch = 0 : i64, scratch_operands = 0 : i64, tpu.core_type = #tpu.core_type<tc>, window_params = [{transform_indices = @transform_0, window_bounds = array<i64: 8, 1>}, {pipeline_mode = #tpu.pipeline_mode<synchronous>, transform_indices = @transform_1, window_bounds = array<i64: 16, 32>}, {transform_indices = @transform_2, window_bounds = array<i64: 8, 32>}]} {
    %c0 = arith.constant 0 : index
    %c0_0 = arith.constant 0 : index
    %0 = vector.load %arg1[%c0, %c0_0] : memref<8x1xi32, #tpu.memory_space<vmem>>, vector<8x1xi32>
    %1 = tpu.iota {dimensions = array<i32: 1>} : vector<8x16xi32>
    %2 = vector.broadcast %0 : vector<8x1xi32> to vector<8x16xi32>
    %3 = arith.cmpi eq, %2, %1 : vector<8x16xi32>
    %4 = arith.extui %3 : vector<8x16xi1> to vector<8x16xi32>
    %5 = arith.sitofp %4 : vector<8x16xi32> to vector<8x16xf32>
    %c0_1 = arith.constant 0 : index
    %c0_2 = arith.constant 0 : index
    %6 = vector.load %arg2[%c0_1, %c0_2] : memref<16x32xf32, #tpu.memory_space<vmem>>, vector<16x32xf32>
    %cst = arith.constant dense<0.000000e+00> : vector<8x32xf32>
    %7 = tpu.matmul %5, %6, %cst {dimension_numbers = #tpu.dot_dimension_numbers<[1], [0], [0], [1], [0, 0, 1, 1], [], []>} : vector<8x16xf32>, vector<16x32xf32>, vector<8x32xf32> -> vector<8x32xf32>
    %c0_3 = arith.constant 0 : index
    %c0_4 = arith.constant 0 : index
    %8 = vector.load %arg3[%c0_3, %c0_4] : memref<8x32xf32, #tpu.memory_space<vmem>>, vector<8x32xf32>
    tpu.vector_store %arg3[%c0_3, %c0_4], %7 {strides = array<i32>} : memref<8x32xf32, #tpu.memory_space<vmem>>, vector<8x32xf32>,
    return
  }
  func.func @transform_0(%arg0: i32) -> (i32, i32) {
    %c0_i32 = arith.constant 0 : i32
    %c0_i32_0 = arith.constant 0 : i32
    return %arg0, %c0_i32 : i32, i32
  }
  func.func @transform_1(%arg0: i32) -> (i32, i32) {
    %c0_i32 = arith.constant 0 : i32
    %c0_i32_0 = arith.constant 0 : i32
    %c0_i32_1 = arith.constant 0 : i32
    return %c0_i32, %c0_i32_0 : i32, i32
  }
  func.func @transform_2(%arg0: i32) -> (i32, i32) {
    %c0_i32 = arith.constant 0 : i32
    %c0_i32_0 = arith.constant 0 : i32
    return %arg0, %c0_i32 : i32, i32
  }
}

</mosaic_0001>

<llo_original>
// kernel: goal_embedding.1
$region0: #{goal_embedding.1}
  #allocation0 [shape = 'u32[]', space=smem, size = 0x4, offset = 0x4, fixed_abs, tag = 'smem constant byte address 0x4 - core index']
  #allocation1 [shape = 'u32[144,128]{1,0:T(1,128)}', space=vmem, size = 0x12000, scoped, tag = 'internal scratch']
  %s0 = inlined_call_operand.vmem [shape: s32[8,1], index: 0, kind: input, shape index: {}]
  %s1 = inlined_call_operand.vmem [shape: f32[16,32], index: 1, kind: input, shape index: {}]
  %s2 = inlined_call_operand.vmem [shape: f32[8,32], index: 2, kind: output, shape index: {}]
  %s3 = sld [smem:[#allocation0]]
  $region18: #{goal_embedding.1} parent=0
    _
  %s5 = ssub.s32 1, %s3
  %s6 = scalar_select 0, %s5, %s3
  // Predicated region
  $region2: #{goal_embedding.1} parent=0 // pred_check
    _
  $region3: #{goal_embedding.1} parent=0 // pred_check_branch
    %8 = sbr.rel (0) target = $region5
  $region4: #{goal_embedding.1} parent=0 // pred_region
    _
  $region5: #{goal_embedding.1} parent=0 // pred_fallthru
    _
  // Predicated region
  $region6: #{goal_embedding.1} parent=0 // pred_check
    _
  $region7: #{goal_embedding.1} parent=0 // pred_check_branch
    %10 = sbr.rel (0) target = $region9
  $region8: #{goal_embedding.1} parent=0 // pred_region
    _
  $region9: #{goal_embedding.1} parent=0 // pred_fallthru
    _
  %v11 = vld [vmem:[%s0] sm:$0xff]
  %v12 = vlaneseq
  %v13 = vand.u32 %v12, 127
  %14 = vset.pattern.permute.xlu0 0
  %15 = vperm.xlu0 %14, %v11
  %v16 = vpop.permute.xlu0 %15
  %vm17 = vcmp.eq.s32.totalorder %v16, %v13
  %v18 = vsel %vm17, 1, 0
  %v19 = vcvt.s32.f32 %v18
  %v20 = vld [vmem:[%s1] sm:$0xff]
  %v21 = vld [vmem:[%s1 + $0x8] sm:$0xff]
  %vm22 = vcmask 130048
  %v24 = vsel %vm22, %v19, 0
  %26 = vmatprep.subr.mxu0 0.0
  %27 = vmatpush1.msra.mxu0 %v20
  %28 = vmatprep.subr.mxu0 0.0
  %29 = vmatpush1.msra.mxu0 %v21
  %30 = vmatprep.subr.mxu0 0.0
  %31 = vmatpush1.msra.mxu0 0.0
  %32 = vmatprep.subr.mxu0 0.0
  %33 = vmatpush1.msra.mxu0 0.0
  %34 = vmatprep.subr.mxu0 0.0
  %35 = vmatpush1.msra.mxu0 0.0
  %36 = vmatprep.subr.mxu0 0.0
  %37 = vmatpush1.msra.mxu0 0.0
  %38 = vmatprep.subr.mxu0 0.0
  %39 = vmatpush1.msra.mxu0 0.0
  %40 = vmatprep.subr.mxu0 0.0
  %41 = vmatpush1.msra.mxu0 0.0
  %42 = vmatprep.subr.mxu0 0.0
  %43 = vmatpush1.msra.mxu0 0.0
  %44 = vmatprep.subr.mxu0 0.0
  %45 = vmatpush1.msra.mxu0 0.0
  %46 = vmatprep.subr.mxu0 0.0
  %47 = vmatpush1.msra.mxu0 0.0
  %48 = vmatprep.subr.mxu0 0.0
  %49 = vmatpush1.msra.mxu0 0.0
  %50 = vmatprep.subr.mxu0 0.0
  %51 = vmatpush1.msra.mxu0 0.0
  %52 = vmatprep.subr.mxu0 0.0
  %53 = vmatpush1.msra.mxu0 0.0
  %54 = vmatprep.subr.mxu0 0.0
  %55 = vmatpush1.msra.mxu0 0.0
  %56 = vmatprep.subr.mxu0 0.0
  %57 = vmatpush1.msra.mxu0 0.0
  %58 = vmatprep.subr.mxu0 0.0
  %59 = vmatpush1.msra.mxu0 0.0
  %60 = vmatprep.subr.mxu0 0.0
  %61 = vmatpush1.msra.mxu0 0.0
  %62 = vmatprep.subr.mxu0 0.0
  %63 = vmatpush1.msra.mxu0 0.0
  %64 = vmatprep.subr.mxu0 0.0
  %65 = vmatpush1.msra.mxu0 0.0
  %66 = vmatprep.subr.mxu0 0.0
  %67 = vmatpush1.msra.mxu0 0.0
  %68 = vmatprep.subr.mxu0 0.0
  %69 = vmatpush1.msra.mxu0 0.0
  %70 = vmatprep.subr.mxu0 0.0
  %71 = vmatpush1.msra.mxu0 0.0
  %72 = vmatprep.subr.mxu0 0.0
  %73 = vmatpush1.msra.mxu0 0.0
  %74 = vmatprep.subr.mxu0 0.0
  %75 = vmatpush1.msra.mxu0 0.0
  %76 = vmatprep.subr.mxu0 0.0
  %77 = vmatpush1.msra.mxu0 0.0
  %78 = vmatprep.subr.mxu0 0.0
  %79 = vmatpush1.msra.mxu0 0.0
  %80 = vmatprep.subr.mxu0 0.0
  %81 = vmatpush1.msra.mxu0 0.0
  %82 = vmatprep.subr.mxu0 0.0
  %83 = vmatpush1.msra.mxu0 0.0
  %84 = vmatprep.subr.mxu0 0.0
  %85 = vmatpush1.msra.mxu0 0.0
  %86 = vmatprep.subr.mxu0 0.0
  %87 = vmatpush1.msra.mxu0 0.0
  %88 = vmatprep.subr.mxu0 0.0
  %89 = vmatpush1.msra.mxu0 0.0
  %90 = vmatprep.mubr.f32.mxu0 0.0
  %91 = vmatmul.mubr.f32.gmra.mrb[0].mxu0 %v24
  %v92 = vpop.f32.mrb[0].mxu0
  %v93 = vadd.f32 0.0, %v92
  %v94 = vpop.f32.mrb[0].mxu0
  %95 = vdwg.mxu0
  %vm96 = vcmask 261120
  %97 = vst.msk [vmem:[%s2] sm:$0xff] %vm96, %v93
  // Predicated region
  $region10: #{goal_embedding.1} parent=0 // pred_check
    _
  $region11: #{goal_embedding.1} parent=0 // pred_check_branch
    %99 = sbr.rel (0) target = $region13
  $region12: #{goal_embedding.1} parent=0 // pred_region
    _
  $region13: #{goal_embedding.1} parent=0 // pred_fallthru
    _
  // Predicated region
  $region14: #{goal_embedding.1} parent=0 // pred_check
    _
  $region15: #{goal_embedding.1} parent=0 // pred_check_branch
    %101 = sbr.rel (0) target = $region17
  $region16: #{goal_embedding.1} parent=0 // pred_region
    _
  $region17: #{goal_embedding.1} parent=0 // pred_fallthru
    _

</llo_original>
